<compile_context>
chip_gen: v7x
topology: tpu7x:2x2x1
jax: 0.10.0
libtpu: 0.0.40
codegen_flags: <defaults>
</compile_context>

<pallas_src>
import jax
import jax.numpy as jnp
from jax import lax
from jax.experimental import pallas as pl
from jax.experimental.pallas import tpu as pltpu

GENERAL_DEPTH = 24


def _action_prob_kernel(x_ref, w1_ref, b1_ref, w2_ref, b2_ref, w3_ref, b3_ref, o_ref):
    # x_ref:  (block_rows, state_dim)   f32  (cast to compute dtype in-kernel)
    # w1_ref: (D1, state_dim)           bf16/f32   (PyTorch layout: out x in)
    # w2_ref: (D2, D1), w3_ref: (A, D2) bf16/f32
    # b*_ref: (out, 1)                  f32
    # o_ref:  (A, block_rows)           f32/bf16   (feature-major, lane-dense)
    cdt = w1_ref.dtype
    x = x_ref[...].astype(cdt)  # in-kernel cast: free VPU work hidden under the state DMA

    # layer 1: h1[f, b] = sum_k w1[f, k] * x[b, k]   (A @ B^T contraction, f32 accumulate)
    h1 = lax.dot_general(
        w1_ref[...], x, (((1,), (1,)), ((), ())),
        preferred_element_type=jnp.float32,
    )
    h1 = jnp.maximum(h1 + b1_ref[...], 0.0)                      # (D1, block_rows) f32

    # layer 2 (MXU in compute dtype, f32 accumulate)
    h2 = jnp.dot(w2_ref[...], h1.astype(cdt), preferred_element_type=jnp.float32)
    h2 = jnp.maximum(h2 + b2_ref[...], 0.0)                      # (D2, block_rows) f32

    # layer 3 -> logits (A, block_rows)
    logits = jnp.dot(w3_ref[...], h2.astype(cdt),
                     preferred_element_type=jnp.float32) + b3_ref[...]

    # log_softmax over the action axis (axis 0 in feature-major layout), f32, stable.
    m = jnp.max(logits, axis=0, keepdims=True)                   # (1, block_rows)
    shifted = logits - m
    lse = jnp.log(jnp.sum(jnp.exp(shifted), axis=0, keepdims=True))
    o_ref[...] = (shifted - lse).astype(o_ref.dtype)


def _round_up(x, m):
    return ((x + m - 1) // m) * m


def action_probability_forward(state, params, *, block_rows=16384, precision="bf16",
                               out_dtype=jnp.float32, feature_major_out=False):
    """state: (B, state_dim) f32.  params: PyTorch-layout weights (out, in), biases (out, 1).

    Returns log_softmax(MLP(state)):
      (B, action_dim) by default (module semantics), or the lane-dense (action_dim, B)
      slab if feature_major_out=True (skips the wrapper-side transpose pass).
    precision: "bf16" (default, MXU in bf16 / f32 accumulate) or "f32" (exact path).
    """
    w1, b1 = params["w1"], params["b1"]
    w2, b2 = params["w2"], params["b2"]
    w3, b3 = params["w3"], params["b3"]

    B, S = state.shape
    A = w3.shape[0]

    # --- choose the batch tile ---------------------------------------------------------
    # Large tiles amortize the ~0.35 us/step grid overhead; clamp to the actual batch and
    # round to a multiple of 128 so the output store is unmasked lane-dense and the input
    # block is sublane-aligned.
    n_blocks = max(1, pl.cdiv(B, block_rows))
    # v7x megacore: make sure a big batch doesn't collapse into a single grid step
    # (the "parallel" axis is the only source of cross-TensorCore parallelism here).
    if n_blocks == 1 and B >= 4096:
        n_blocks = 2
    br = _round_up(pl.cdiv(B, n_blocks), 128)
    Bp = n_blocks * br

    # Ragged tail: pad only when needed (batches that are already a multiple of the tile
    # pay no extra HBM pass). Padded rows produce finite garbage that is sliced off below.
    if Bp != B:
        state = jnp.pad(state, ((0, Bp - B), (0, 0)))

    # Weights in the compute dtype (tiny arrays, negligible cast cost); biases stay f32.
    cdt = jnp.bfloat16 if precision == "bf16" else jnp.float32
    w1c, w2c, w3c = w1.astype(cdt), w2.astype(cdt), w3.astype(cdt)

    resident = lambda arr: pl.BlockSpec(arr.shape, lambda i, _n=arr.ndim: (0,) * _n)

    out_t = pl.pallas_call(
        _action_prob_kernel,
        out_shape=jax.ShapeDtypeStruct((A, Bp), out_dtype),
        grid=(n_blocks,),
        in_specs=[
            pl.BlockSpec((br, S), lambda i: (i, 0)),   # state: batch-tiled, f32 (cast in-kernel)
            resident(w1c),                             # weights/biases: VMEM-resident
            resident(b1),
            resident(w2c),
            resident(b2),
            resident(w3c),
            resident(b3),
        ],
        out_specs=pl.BlockSpec((A, br), lambda i: (0, i)),  # lane-dense output slab
        compiler_params=pltpu.CompilerParams(
            dimension_semantics=("parallel",),         # megacore sharding on v7x
            vmem_limit_bytes=48 * 1024 * 1024,         # headroom for 64k-row tiles, v7x-safe
        ),
    )(state, w1c, b1, w2c, b2, w3c, b3)

    if feature_major_out:
        return out_t[:, :B]            # (A, B): callers that can consume it skip a transpose pass
    return out_t[:, :B].T              # (B, A): module's layout


def init_params(key, state_shape, action_shape):
    """Deterministic PyTorch-Linear-style init (uniform +/- 1/sqrt(fan_in)).

    Weights stored in PyTorch layout (out_features, in_features); biases as (out, 1).
    """
    ks = jax.random.split(key, 6)

    def linear(kw, kb, fan_in, fan_out):
        bound = 1.0 / jnp.sqrt(jnp.float32(fan_in))
        w = jax.random.uniform(kw, (fan_out, fan_in), jnp.float32, -bound, bound)
        b = jax.random.uniform(kb, (fan_out, 1), jnp.float32, -bound, bound)
        return w, b

    w1, b1 = linear(ks[0], ks[1], state_shape, GENERAL_DEPTH)
    w2, b2 = linear(ks[2], ks[3], GENERAL_DEPTH, GENERAL_DEPTH)
    w3, b3 = linear(ks[4], ks[5], GENERAL_DEPTH, action_shape)
    return dict(w1=w1, b1=b1, w2=w2, b2=b2, w3=w3, b3=b3)


if __name__ == "__main__":
    key = jax.random.PRNGKey(0)
    k_state, k_params, k_state2 = jax.random.split(key, 3)

    batch = 8
    state_shape = 16   # feature dim of the state
    action_shape = 4   # number of discrete actions

    state = jax.random.normal(k_state, (batch, state_shape), jnp.float32)
    params = init_params(k_params, state_shape, action_shape)

    def ref_fwd(s):
        h1 = jnp.maximum(s @ params["w1"].T + params["b1"].T, 0.0)
        h2 = jnp.maximum(h1 @ params["w2"].T + params["b2"].T, 0.0)
        logits = h2 @ params["w3"].T + params["b3"].T
        return jax.nn.log_softmax(logits, axis=1)

    # small batch (single tile, padded)
    out = jax.block_until_ready(action_probability_forward(state, params))
    ref = ref_fwd(state)
    assert out.shape == (batch, action_shape), out.shape
    assert jnp.allclose(out, ref, atol=5e-2, rtol=5e-2), float(jnp.max(jnp.abs(out - ref)))

    # ragged multi-block path (3 grid steps, padded tail)
    batch2 = 300
    state2 = jax.random.normal(k_state2, (batch2, state_shape), jnp.float32)
    out2 = jax.block_until_ready(
        action_probability_forward(state2, params, block_rows=128))
    ref2 = ref_fwd(state2)
    assert out2.shape == (batch2, action_shape), out2.shape
    assert jnp.allclose(out2, ref2, atol=5e-2, rtol=5e-2), float(jnp.max(jnp.abs(out2 - ref2)))

    # exact-precision switch
    out3 = jax.block_until_ready(
        action_probability_forward(state, params, precision="f32"))
    assert jnp.allclose(out3, ref, atol=1e-5, rtol=1e-5), float(jnp.max(jnp.abs(out3 - ref)))

    print("KERNEL_OK")
</pallas_src>

<mosaic_0001>
module attributes {stable_mosaic.version = 11 : i64} {
  func.func @_action_prob_kernel(%arg0: i32, %arg1: memref<128x16xf32, #tpu.memory_space<vmem>>, %arg2: memref<24x16xbf16, #tpu.memory_space<vmem>>, %arg3: memref<24x1xf32, #tpu.memory_space<vmem>>, %arg4: memref<24x24xbf16, #tpu.memory_space<vmem>>, %arg5: memref<24x1xf32, #tpu.memory_space<vmem>>, %arg6: memref<4x24xbf16, #tpu.memory_space<vmem>>, %arg7: memref<4x1xf32, #tpu.memory_space<vmem>>, %arg8: memref<4x128xf32, #tpu.memory_space<vmem>>) attributes {dimension_semantics = [#tpu.dimension_semantics<parallel>], iteration_bounds = array<i64: 1>, scalar_prefetch = 0 : i64, scratch_operands = 0 : i64, tpu.core_type = #tpu.core_type<tc>, window_params = [{transform_indices = @transform_0, window_bounds = array<i64: 128, 16>}, {pipeline_mode = #tpu.pipeline_mode<synchronous>, transform_indices = @transform_1, window_bounds = array<i64: 24, 16>}, {pipeline_mode = #tpu.pipeline_mode<synchronous>, transform_indices = @transform_2, window_bounds = array<i64: 24, 1>}, {pipeline_mode = #tpu.pipeline_mode<synchronous>, transform_indices = @transform_3, window_bounds = array<i64: 24, 24>}, {pipeline_mode = #tpu.pipeline_mode<synchronous>, transform_indices = @transform_4, window_bounds = array<i64: 24, 1>}, {pipeline_mode = #tpu.pipeline_mode<synchronous>, transform_indices = @transform_5, window_bounds = array<i64: 4, 24>}, {pipeline_mode = #tpu.pipeline_mode<synchronous>, transform_indices = @transform_6, window_bounds = array<i64: 4, 1>}, {transform_indices = @transform_7, window_bounds = array<i64: 4, 128>}]} {
    %c0 = arith.constant 0 : index
    %c0_0 = arith.constant 0 : index
    %0 = vector.load %arg1[%c0, %c0_0] : memref<128x16xf32, #tpu.memory_space<vmem>>, vector<128x16xf32>
    %1 = arith.truncf %0 : vector<128x16xf32> to vector<128x16xbf16>
    %c0_1 = arith.constant 0 : index
    %c0_2 = arith.constant 0 : index
    %2 = vector.load %arg2[%c0_1, %c0_2] : memref<24x16xbf16, #tpu.memory_space<vmem>>, vector<24x16xbf16>
    %cst = arith.constant dense<0.000000e+00> : vector<24x128xf32>
    %3 = tpu.matmul %2, %1, %cst {dimension_numbers = #tpu.dot_dimension_numbers<[1], [1], [0], [0], [0, 0, 1, 0], [], []>} : vector<24x16xbf16>, vector<128x16xbf16>, vector<24x128xf32> -> vector<24x128xf32>
    %c0_3 = arith.constant 0 : index
    %c0_4 = arith.constant 0 : index
    %4 = vector.load %arg3[%c0_3, %c0_4] : memref<24x1xf32, #tpu.memory_space<vmem>>, vector<24x1xf32>
    %5 = vector.broadcast %4 : vector<24x1xf32> to vector<24x128xf32>
    %6 = arith.addf %3, %5 : vector<24x128xf32>
    %cst_5 = arith.constant 0.000000e+00 : f32
    %7 = vector.broadcast %cst_5 : f32 to vector<24x128xf32>
    %8 = arith.maximumf %6, %7 : vector<24x128xf32>
    %c0_6 = arith.constant 0 : index
    %c0_7 = arith.constant 0 : index
    %9 = vector.load %arg4[%c0_6, %c0_7] : memref<24x24xbf16, #tpu.memory_space<vmem>>, vector<24x24xbf16>
    %10 = arith.truncf %8 : vector<24x128xf32> to vector<24x128xbf16>
    %cst_8 = arith.constant dense<0.000000e+00> : vector<24x128xf32>
    %11 = tpu.matmul %9, %10, %cst_8 {dimension_numbers = #tpu.dot_dimension_numbers<[1], [0], [0], [1], [0, 0, 1, 1], [], []>} : vector<24x24xbf16>, vector<24x128xbf16>, vector<24x128xf32> -> vector<24x128xf32>
    %c0_9 = arith.constant 0 : index
    %c0_10 = arith.constant 0 : index
    %12 = vector.load %arg5[%c0_9, %c0_10] : memref<24x1xf32, #tpu.memory_space<vmem>>, vector<24x1xf32>
    %13 = vector.broadcast %12 : vector<24x1xf32> to vector<24x128xf32>
    %14 = arith.addf %11, %13 : vector<24x128xf32>
    %cst_11 = arith.constant 0.000000e+00 : f32
    %15 = vector.broadcast %cst_11 : f32 to vector<24x128xf32>
    %16 = arith.maximumf %14, %15 : vector<24x128xf32>
    %c0_12 = arith.constant 0 : index
    %c0_13 = arith.constant 0 : index
    %17 = vector.load %arg6[%c0_12, %c0_13] : memref<4x24xbf16, #tpu.memory_space<vmem>>, vector<4x24xbf16>
    %18 = arith.truncf %16 : vector<24x128xf32> to vector<24x128xbf16>
    %cst_14 = arith.constant dense<0.000000e+00> : vector<4x128xf32>
    %19 = tpu.matmul %17, %18, %cst_14 {dimension_numbers = #tpu.dot_dimension_numbers<[1], [0], [0], [1], [0, 0, 1, 1], [], []>} : vector<4x24xbf16>, vector<24x128xbf16>, vector<4x128xf32> -> vector<4x128xf32>
    %c0_15 = arith.constant 0 : index
    %c0_16 = arith.constant 0 : index
    %20 = vector.load %arg7[%c0_15, %c0_16] : memref<4x1xf32, #tpu.memory_space<vmem>>, vector<4x1xf32>
    %21 = vector.broadcast %20 : vector<4x1xf32> to vector<4x128xf32>
    %22 = arith.addf %19, %21 : vector<4x128xf32>
    %cst_17 = arith.constant dense<0xFF800000> : vector<128xf32>
    %23 = vector.multi_reduction <maximumf>, %22, %cst_17 [0] : vector<4x128xf32> to vector<128xf32>
    %24 = vector.shape_cast %23 : vector<128xf32> to vector<1x128xf32>
    %25 = vector.broadcast %24 : vector<1x128xf32> to vector<4x128xf32>
    %26 = arith.subf %22, %25 : vector<4x128xf32>
    %27 = math.exp %26 : vector<4x128xf32>
    %cst_18 = arith.constant dense<0.000000e+00> : vector<128xf32>
    %28 = vector.multi_reduction <add>, %27, %cst_18 [0] : vector<4x128xf32> to vector<128xf32>
    %29 = vector.shape_cast %28 : vector<128xf32> to vector<1x128xf32>
    %30 = math.log %29 : vector<1x128xf32>
    %31 = vector.broadcast %30 : vector<1x128xf32> to vector<4x128xf32>
    %32 = arith.subf %26, %31 : vector<4x128xf32>
    %c0_19 = arith.constant 0 : index
    %c0_20 = arith.constant 0 : index
    %33 = vector.load %arg8[%c0_19, %c0_20] : memref<4x128xf32, #tpu.memory_space<vmem>>, vector<4x128xf32>
    tpu.vector_store %arg8[%c0_19, %c0_20], %32 {strides = array<i32>} : memref<4x128xf32, #tpu.memory_space<vmem>>, vector<4x128xf32>,
    return
  }
  func.func @transform_0(%arg0: i32) -> (i32, i32) {
    %c0_i32 = arith.constant 0 : i32
    %c0_i32_0 = arith.constant 0 : i32
    return %arg0, %c0_i32 : i32, i32
  }
  func.func @transform_1(%arg0: i32) -> (i32, i32) {
    %c0_i32 = arith.constant 0 : i32
    %c0_i32_0 = arith.constant 0 : i32
    %c0_i32_1 = arith.constant 0 : i32
    return %c0_i32, %c0_i32_0 : i32, i32
  }
  func.func @transform_2(%arg0: i32) -> (i32, i32) {
    %c0_i32 = arith.constant 0 : i32
    %c0_i32_0 = arith.constant 0 : i32
    %c0_i32_1 = arith.constant 0 : i32
    return %c0_i32, %c0_i32_0 : i32, i32
  }
  func.func @transform_3(%arg0: i32) -> (i32, i32) {
    %c0_i32 = arith.constant 0 : i32
    %c0_i32_0 = arith.constant 0 : i32
    %c0_i32_1 = arith.constant 0 : i32
    return %c0_i32, %c0_i32_0 : i32, i32
  }
  func.func @transform_4(%arg0: i32) -> (i32, i32) {
    %c0_i32 = arith.constant 0 : i32
    %c0_i32_0 = arith.constant 0 : i32
    %c0_i32_1 = arith.constant 0 : i32
    return %c0_i32, %c0_i32_0 : i32, i32
  }
  func.func @transform_5(%arg0: i32) -> (i32, i32) {
    %c0_i32 = arith.constant 0 : i32
    %c0_i32_0 = arith.constant 0 : i32
    %c0_i32_1 = arith.constant 0 : i32
    return %c0_i32, %c0_i32_0 : i32, i32
  }
  func.func @transform_6(%arg0: i32) -> (i32, i32) {
    %c0_i32 = arith.constant 0 : i32
    %c0_i32_0 = arith.constant 0 : i32
    %c0_i32_1 = arith.constant 0 : i32
    return %c0_i32, %c0_i32_0 : i32, i32
  }
  func.func @transform_7(%arg0: i32) -> (i32, i32) {
    %c0_i32 = arith.constant 0 : i32
    %c0_i32_0 = arith.constant 0 : i32
    return %c0_i32, %arg0 : i32, i32
  }
}

</mosaic_0001>

<llo_original>
// kernel: tpu_custom_call.1
$region0: #{tpu_custom_call.1}
  #allocation0 [shape = 'u32[]', space=smem, size = 0x4, offset = 0x4, fixed_abs, tag = 'smem constant byte address 0x4 - core index']
  #allocation1 [shape = 'u32[144,128]{1,0:T(1,128)}', space=vmem, size = 0x12000, scoped, tag = 'internal scratch']
  %s0 = inlined_call_operand.vmem [shape: f32[128,16], index: 0, kind: input, shape index: {}]
  %s1 = inlined_call_operand.vmem [shape: bf16[24,16], index: 1, kind: input, shape index: {}]
  %s2 = inlined_call_operand.vmem [shape: f32[24,1], index: 2, kind: input, shape index: {}]
  %s3 = inlined_call_operand.vmem [shape: bf16[24,24], index: 3, kind: input, shape index: {}]
  %s4 = inlined_call_operand.vmem [shape: f32[24,1], index: 4, kind: input, shape index: {}]
  %s5 = inlined_call_operand.vmem [shape: bf16[4,24], index: 5, kind: input, shape index: {}]
  %s6 = inlined_call_operand.vmem [shape: f32[4,1], index: 6, kind: input, shape index: {}]
  %s7 = inlined_call_operand.hbm [shape: f32[4,128], index: 7, kind: output, shape index: {}]
  %s8 = sld [smem:[#allocation0]]
  $region38: #{tpu_custom_call.1} parent=0
    _
  %s10 = ssub.s32 1, %s8
  %s11 = scalar_select 0, %s10, %s8
  $region1: #{tpu_custom_call.1} parent=0
    #allocation2 [shape = 'u8[2048]{0}', space=vmem, size = 0x800, scoped, tag = 'output window, operand 0, single buffered']
    #allocation3 [shape = 's32[1]{0}', space=sflag, size = 0x4, scoped, tag = 'scoped memory for tpu_custom_call.1']
    %12 = vsyncpa [#allocation3], 0
    // Predicated region
    $region2: #{tpu_custom_call.1} parent=1 // pred_check
      _
    $region3: #{tpu_custom_call.1} parent=1 // pred_check_branch
      %14 = sbr.rel (0) target = $region5
    $region4: #{tpu_custom_call.1} parent=1 // pred_region
      _
    $region5: #{tpu_custom_call.1} parent=1 // pred_fallthru
      _
    // Predicated region
    $region6: #{tpu_custom_call.1} parent=1 // pred_check
      _
    $region7: #{tpu_custom_call.1} parent=1 // pred_check_branch
      %16 = sbr.rel (0) target = $region9
    $region8: #{tpu_custom_call.1} parent=1 // pred_region
      _
    $region9: #{tpu_custom_call.1} parent=1 // pred_fallthru
      _
    // Predicated region
    $region10: #{tpu_custom_call.1} parent=1 // pred_check
      _
    $region11: #{tpu_custom_call.1} parent=1 // pred_check_branch
      %18 = sbr.rel (0) target = $region13
    $region12: #{tpu_custom_call.1} parent=1 // pred_region
      _
    $region13: #{tpu_custom_call.1} parent=1 // pred_fallthru
      _
    // Predicated region
    $region14: #{tpu_custom_call.1} parent=1 // pred_check
      _
    $region15: #{tpu_custom_call.1} parent=1 // pred_check_branch
      %20 = sbr.rel (0) target = $region17
    $region16: #{tpu_custom_call.1} parent=1 // pred_region
      _
    $region17: #{tpu_custom_call.1} parent=1 // pred_fallthru
      _
    // Predicated region
    $region18: #{tpu_custom_call.1} parent=1 // pred_check
      _
    $region19: #{tpu_custom_call.1} parent=1 // pred_check_branch
      %22 = sbr.rel (0) target = $region21
    $region20: #{tpu_custom_call.1} parent=1 // pred_region
      _
    $region21: #{tpu_custom_call.1} parent=1 // pred_fallthru
      _
    // Predicated region
    $region22: #{tpu_custom_call.1} parent=1 // pred_check
      _
    $region23: #{tpu_custom_call.1} parent=1 // pred_check_branch
      %24 = sbr.rel (0) target = $region25
    $region24: #{tpu_custom_call.1} parent=1 // pred_region
      _
    $region25: #{tpu_custom_call.1} parent=1 // pred_fallthru
      _
    // Predicated region
    $region26: #{tpu_custom_call.1} parent=1 // pred_check
      _
    $region27: #{tpu_custom_call.1} parent=1 // pred_check_branch
      %26 = sbr.rel (0) target = $region29
    $region28: #{tpu_custom_call.1} parent=1 // pred_region
      _
    $region29: #{tpu_custom_call.1} parent=1 // pred_fallthru
      _
    %v28 = vld [vmem:[%s0] sm:$0xff]
    %v29 = vld [vmem:[%s0 + $0x8] sm:$0xff]
    %v30 = vld [vmem:[%s0 + $0x10] sm:$0xff]
    %v31 = vld [vmem:[%s0 + $0x18] sm:$0xff]
    %v32 = vld [vmem:[%s0 + $0x20] sm:$0xff]
    %v33 = vld [vmem:[%s0 + $0x28] sm:$0xff]
    %v34 = vld [vmem:[%s0 + $0x30] sm:$0xff]
    %v35 = vld [vmem:[%s0 + $0x38] sm:$0xff]
    %v36 = vld [vmem:[%s0 + $0x40] sm:$0xff]
    %v37 = vld [vmem:[%s0 + $0x48] sm:$0xff]
    %v38 = vld [vmem:[%s0 + $0x50] sm:$0xff]
    %v39 = vld [vmem:[%s0 + $0x58] sm:$0xff]
    %v40 = vld [vmem:[%s0 + $0x60] sm:$0xff]
    %v41 = vld [vmem:[%s0 + $0x68] sm:$0xff]
    %v42 = vld [vmem:[%s0 + $0x70] sm:$0xff]
    %v43 = vld [vmem:[%s0 + $0x78] sm:$0xff]
    %v44 = vpack.c.bf16 %v29, %v28
    %v45 = vpack.c.bf16 %v31, %v30
    %v46 = vpack.c.bf16 %v33, %v32
    %v47 = vpack.c.bf16 %v35, %v34
    %v48 = vpack.c.bf16 %v37, %v36
    %v49 = vpack.c.bf16 %v39, %v38
    %v50 = vpack.c.bf16 %v41, %v40
    %v51 = vpack.c.bf16 %v43, %v42
    %v52 = vld [vmem:[%s1] sm:$0xf]
    %v53 = vld [vmem:[%s1 + $0x4] sm:$0xf]
    %v54 = vld [vmem:[%s1 + $0x8] sm:$0xf]
    %v55 = vld [vmem:[%s2] sm:$0xff]
    %v56 = vld [vmem:[%s2 + $0x8] sm:$0xff]
    %v57 = vld [vmem:[%s2 + $0x10] sm:$0xff]
    %59 = vset.pattern.permute.xlu0 0
    %60 = vperm.xlu0 %59, %v55
    %v61 = vpop.permute.xlu0 %60
    %64 = vset.pattern.permute.xlu0 0
    %65 = vperm.xlu0 %64, %v56
    %v66 = vpop.permute.xlu0 %65
    %69 = vset.pattern.permute.xlu0 0
    %70 = vperm.xlu0 %69, %v57
    %v71 = vpop.permute.xlu0 %70
    %v76 = vunpack.c.l.b16 %v52
    %v77 = vunpack.c.l.b16 %v53
    %v78 = vunpack.c.l.b16 %v54
    %v79 = vpack.c.b16 %v77, %v76
    %v80 = vpack.c.b16 %v78, %v78
    %vm81 = vcmask 130048
    %v83 = vsel %vm81, %v79, 0
    %v86 = vsel %vm81, %v80, 0
    %v89 = vsel %vm81, %v44, 0
    %v92 = vsel %vm81, %v45, 0
    %v95 = vsel %vm81, %v46, 0
    %v98 = vsel %vm81, %v47, 0
    %v101 = vsel %vm81, %v48, 0
    %v104 = vsel %vm81, %v49, 0
    %v107 = vsel %vm81, %v50, 0
    %v110 = vsel %vm81, %v51, 0
    %112 = vmatprep.subr.bf16.mxu0 0
    %113 = vmatpush1.bf16.xpose.msra.mxu0 %v89
    %114 = vmatprep.subr.bf16.mxu0 0
    %115 = vmatpush1.bf16.xpose.msra.mxu0 %v92
    %116 = vmatprep.subr.bf16.mxu0 0
    %117 = vmatpush1.bf16.xpose.msra.mxu0 %v95
    %118 = vmatprep.subr.bf16.mxu0 0
    %119 = vmatpush1.bf16.xpose.msra.mxu0 %v98
    %120 = vmatprep.subr.bf16.mxu0 0
    %121 = vmatpush1.bf16.xpose.msra.mxu0 %v101
    %122 = vmatprep.subr.bf16.mxu0 0
    %123 = vmatpush1.bf16.xpose.msra.mxu0 %v104
    %124 = vmatprep.subr.bf16.mxu0 0
    %125 = vmatpush1.bf16.xpose.msra.mxu0 %v107
    %126 = vmatprep.subr.bf16.mxu0 0
    %127 = vmatpush1.bf16.xpose.msra.mxu0 %v110
    %128 = vmatprep.subr.bf16.mxu0 0
    %129 = vmatpush1.bf16.xpose.msra.mxu0 0
    %130 = vmatprep.subr.bf16.mxu0 0
    %131 = vmatpush1.bf16.xpose.msra.mxu0 0
    %132 = vmatprep.subr.bf16.mxu0 0
    %133 = vmatpush1.bf16.xpose.msra.mxu0 0
    %134 = vmatprep.subr.bf16.mxu0 0
    %135 = vmatpush1.bf16.xpose.msra.mxu0 0
    %136 = vmatprep.subr.bf16.mxu0 0
    %137 = vmatpush1.bf16.xpose.msra.mxu0 0
    %138 = vmatprep.subr.bf16.mxu0 0
    %139 = vmatpush1.bf16.xpose.msra.mxu0 0
    %140 = vmatprep.subr.bf16.mxu0 0
    %141 = vmatpush1.bf16.xpose.msra.mxu0 0
    %142 = vmatprep.subr.bf16.mxu0 0
    %143 = vmatpush1.bf16.xpose.msra.mxu0 0
    %144 = vmatprep.mubr.bf16.mxu0 0
    %145 = vmatmul.mubr.bf16.gmra.mrb[0].mxu0 %v83
    %v146 = vpop.f32.mrb[0].mxu0
    %v147 = vadd.f32 %v61, %v146
    %v148 = vpop.f32.mrb[0].mxu0
    %v149 = vpop.f32.mrb[0].mxu0
    %v150 = vadd.f32 %v66, %v149
    %v151 = vpop.f32.mrb[0].mxu0
    %152 = vmatprep.mubr.bf16.mxu0 0
    %153 = vmatmul.mubr.bf16.gmra.mrb[0].mxu0 %v86
    %v154 = vpop.f32.mrb[0].mxu0
    %v155 = vadd.f32 %v71, %v154
    %v156 = vpop.f32.mrb[0].mxu0
    %v157 = vpop.f32.mrb[0].mxu0
    %v158 = vpop.f32.mrb[0].mxu0
    %159 = vdwg.mxu0
    %v160 = vmax.f32 %v147, 0.0
    %v161 = vmax.f32 %v150, 0.0
    %v162 = vmax.f32 %v155, 0.0
    %v163 = vld [vmem:[%s3] sm:$0xf]
    %v164 = vld [vmem:[%s3 + $0x4] sm:$0xf]
    %v165 = vld [vmem:[%s3 + $0x8] sm:$0xf]
    %v166 = vpack.c.bf16 %v161, %v160
    %v167 = vpack.c.bf16 %v162, %v162
    %v168 = vld [vmem:[%s4] sm:$0xff]
    %v169 = vld [vmem:[%s4 + $0x8] sm:$0xff]
    %v170 = vld [vmem:[%s4 + $0x10] sm:$0xff]
    %172 = vset.pattern.permute.xlu0 0
    %173 = vperm.xlu0 %172, %v168
    %v174 = vpop.permute.xlu0 %173
    %177 = vset.pattern.permute.xlu0 0
    %178 = vperm.xlu0 %177, %v169
    %v179 = vpop.permute.xlu0 %178
    %182 = vset.pattern.permute.xlu0 0
    %183 = vperm.xlu0 %182, %v170
    %v184 = vpop.permute.xlu0 %183
    %v189 = vunpack.c.l.b16 %v163
    %v190 = vunpack.c.l.b16 %v164
    %v191 = vunpack.c.l.b16 %v165
    %v192 = vpack.c.b16 %v190, %v189
    %v193 = vpack.c.b16 %v191, %v191
    %vm194 = vcmask 195584
    %v196 = vsel %vm194, %v192, 0
    %v199 = vsel %vm194, %v193, 0
    %vm201 = vcmask 1043456
    %v203 = vsel %vm201, %v167, 0
    %205 = vmatprep.subr.bf16.mxu0 0
    %206 = vmatpush1.bf16.msra.mxu0 %v166
    %207 = vmatprep.subr.bf16.mxu0 0
    %208 = vmatpush1.bf16.msra.mxu0 %v203
    %209 = vmatprep.subr.bf16.mxu0 0
    %210 = vmatpush1.bf16.msra.mxu0 0
    %211 = vmatprep.subr.bf16.mxu0 0
    %212 = vmatpush1.bf16.msra.mxu0 0
    %213 = vmatprep.subr.bf16.mxu0 0
    %214 = vmatpush1.bf16.msra.mxu0 0
    %215 = vmatprep.subr.bf16.mxu0 0
    %216 = vmatpush1.bf16.msra.mxu0 0
    %217 = vmatprep.subr.bf16.mxu0 0
    %218 = vmatpush1.bf16.msra.mxu0 0
    %219 = vmatprep.subr.bf16.mxu0 0
    %220 = vmatpush1.bf16.msra.mxu0 0
    %221 = vmatprep.subr.bf16.mxu0 0
    %222 = vmatpush1.bf16.msra.mxu0 0
    %223 = vmatprep.subr.bf16.mxu0 0
    %224 = vmatpush1.bf16.msra.mxu0 0
    %225 = vmatprep.subr.bf16.mxu0 0
    %226 = vmatpush1.bf16.msra.mxu0 0
    %227 = vmatprep.subr.bf16.mxu0 0
    %228 = vmatpush1.bf16.msra.mxu0 0
    %229 = vmatprep.subr.bf16.mxu0 0
    %230 = vmatpush1.bf16.msra.mxu0 0
    %231 = vmatprep.subr.bf16.mxu0 0
    %232 = vmatpush1.bf16.msra.mxu0 0
    %233 = vmatprep.subr.bf16.mxu0 0
    %234 = vmatpush1.bf16.msra.mxu0 0
    %235 = vmatprep.subr.bf16.mxu0 0
    %236 = vmatpush1.bf16.msra.mxu0 0
    %237 = vmatprep.mubr.bf16.mxu0 0
    %238 = vmatmul.mubr.bf16.gmra.mrb[0].mxu0 %v196
    %v239 = vpop.f32.mrb[0].mxu0
    %v240 = vadd.f32 %v174, %v239
    %v241 = vpop.f32.mrb[0].mxu0
    %v242 = vpop.f32.mrb[0].mxu0
    %v243 = vadd.f32 %v179, %v242
    %v244 = vpop.f32.mrb[0].mxu0
    %245 = vmatprep.mubr.bf16.mxu0 0
    %246 = vmatmul.mubr.bf16.gmra.mrb[0].mxu0 %v199
    %v247 = vpop.f32.mrb[0].mxu0
    %v248 = vadd.f32 %v184, %v247
    %v249 = vpop.f32.mrb[0].mxu0
    %v250 = vpop.f32.mrb[0].mxu0
    %v251 = vpop.f32.mrb[0].mxu0
    %252 = vdwg.mxu0
    %v253 = vmax.f32 %v240, 0.0
    %v254 = vmax.f32 %v243, 0.0
    %v255 = vmax.f32 %v248, 0.0
    %v256 = vld [vmem:[%s5] sm:$0x3]
    %v257 = vpack.c.bf16 %v254, %v253
    %v258 = vpack.c.bf16 %v255, %v255
    %v259 = vld [vmem:[%s6] sm:$0xf]
    %261 = vset.pattern.permute.xlu0 0
    %262 = vperm.xlu0 %261, %v259
    %v263 = vpop.permute.xlu0 %262
    %v266 = vsel %vm194, %v256, 0
    %v269 = vsel %vm201, %v258, 0
    %271 = vmatprep.subr.bf16.mxu0 0
    %272 = vmatpush1.bf16.msra.mxu0 %v257
    %273 = vmatprep.subr.bf16.mxu0 0
    %274 = vmatpush1.bf16.msra.mxu0 %v269
    %275 = vmatprep.subr.bf16.mxu0 0
    %276 = vmatpush1.bf16.msra.mxu0 0
    %277 = vmatprep.subr.bf16.mxu0 0
    %278 = vmatpush1.bf16.msra.mxu0 0
    %279 = vmatprep.subr.bf16.mxu0 0
    %280 = vmatpush1.bf16.msra.mxu0 0
    %281 = vmatprep.subr.bf16.mxu0 0
    %282 = vmatpush1.bf16.msra.mxu0 0
    %283 = vmatprep.subr.bf16.mxu0 0
    %284 = vmatpush1.bf16.msra.mxu0 0
    %285 = vmatprep.subr.bf16.mxu0 0
    %286 = vmatpush1.bf16.msra.mxu0 0
    %287 = vmatprep.subr.bf16.mxu0 0
    %288 = vmatpush1.bf16.msra.mxu0 0
    %289 = vmatprep.subr.bf16.mxu0 0
    %290 = vmatpush1.bf16.msra.mxu0 0
    %291 = vmatprep.subr.bf16.mxu0 0
    %292 = vmatpush1.bf16.msra.mxu0 0
    %293 = vmatprep.subr.bf16.mxu0 0
    %294 = vmatpush1.bf16.msra.mxu0 0
    %295 = vmatprep.subr.bf16.mxu0 0
    %296 = vmatpush1.bf16.msra.mxu0 0
    %297 = vmatprep.subr.bf16.mxu0 0
    %298 = vmatpush1.bf16.msra.mxu0 0
    %299 = vmatprep.subr.bf16.mxu0 0
    %300 = vmatpush1.bf16.msra.mxu0 0
    %301 = vmatprep.subr.bf16.mxu0 0
    %302 = vmatpush1.bf16.msra.mxu0 0
    %303 = vmatprep.mubr.bf16.mxu0 0
    %304 = vmatmul.mubr.bf16.gmra.mrb[0].mxu0 %v266
    %v305 = vpop.f32.mrb[0].mxu0
    %v306 = vadd.f32 %v263, %v305
    %v307 = vpop.f32.mrb[0].mxu0
    %v308 = vpop.f32.mrb[0].mxu0
    %v309 = vpop.f32.mrb[0].mxu0
    %310 = vdwg.mxu0
    %v311 = vsel %vm201, %v306, -inf
    %v312 = vrot.slane %v311, 4
    %v313 = vmax.f32 %v311, %v312
    %v314 = vrot.slane %v313, 2
    %v315 = vmax.f32 %v313, %v314
    %v316 = vrot.slane %v315, 1
    %v317 = vmax.f32 %v315, %v316
    %v318 = vsub.f32 %v306, %v317
    %v319 = vmul.f32 %v318, 1.442695
    %v320 = vpow.pop %v319
    %v321 = vsel %vm201, %v320, 0.0
    %v322 = vrot.slane %v321, 4
    %v323 = vadd.f32 %v321, %v322
    %v324 = vrot.slane %v323, 2
    %v325 = vadd.f32 %v323, %v324
    %v326 = vrot.slane %v325, 1
    %v327 = vadd.f32 %v325, %v326
    %v328 = vlog2.pop %v327
    %v329 = vmul.f32 %v328, 0.6931472
    %v330 = vsub.f32 %v318, %v329
    %331 = vst [vmem:[#allocation2] sm:$0xf] %v330
    // Predicated region
    $region30: #{tpu_custom_call.1} parent=1 // pred_check
      _
    $region31: #{tpu_custom_call.1} parent=1 // pred_check_branch
      %333 = sbr.rel (0) target = $region33
    $region32: #{tpu_custom_call.1} parent=1 // pred_region
      %s335 = ssub.s32 64, 64
      %336 = vsyncadd [#allocation3], %s335
      %s338 = sshll.u32 [#allocation2], 4
      %s339 = int_to_ptr.vmem [resolvable:$true] %s338
      %341 = dma.vmem_to_hbm [thread:$0]  %s339, 64, %s7, [#allocation3]
    $region33: #{tpu_custom_call.1} parent=1 // pred_fallthru
      _
    // Predicated region
    $region34: #{tpu_custom_call.1} parent=1 // pred_check
      _
    $region35: #{tpu_custom_call.1} parent=1 // pred_check_branch
      %343 = sbr.rel (0) target = $region37
    $region36: #{tpu_custom_call.1} parent=1 // pred_region
      %344 = dma.done [#allocation3], 64
    $region37: #{tpu_custom_call.1} parent=1 // pred_fallthru
      _
    %345 = vsyncpa [#allocation3], 1

</llo_original>
